<compile_context>
chip_gen: v6e
topology: v6e:2x2x1
jax: 0.10.0
libtpu: 0.0.40
codegen_flags: <defaults>
</compile_context>

<pallas_src>
import functools

import jax
import jax.numpy as jnp
from jax.experimental import pallas as pl
from jax.experimental.pallas import tpu as pltpu


def _round_up(a, m):
    return (a + m - 1) // m * m


# ---------------- Call 1: conv (one MXU matmul per tile) + BN statistics ------------
def _conv_stats_kernel(x_ref, w_ref, acc_ref, stats_ref):
    # x_ref:     (CK_pad, lane_tile)   im2col tile (lane axis = flattened N*L)
    # w_ref:     (C_out_pad, CK_pad)   resident weight
    # acc_ref:   (C_out_pad, lane_tile) unnormalized conv output tile (f32)
    # stats_ref: (C_out_pad, 256)      pinned accumulator: lanes [0,128)=sum,
    #                                  lanes [128,256)=sum-of-squares
    t = pl.program_id(0)

    acc = jnp.dot(w_ref[...], x_ref[...], preferred_element_type=jnp.float32)
    acc_ref[...] = acc  # written exactly once per tile; re-read by the normalize call

    @pl.when(t == 0)
    def _init():
        stats_ref[...] = jnp.zeros_like(stats_ref)

    s = jnp.sum(acc, axis=1, keepdims=True)        # (C_out_pad, 1)
    q = jnp.sum(acc * acc, axis=1, keepdims=True)  # (C_out_pad, 1)
    # Lane-broadcast accumulate into 128-lane-aligned column slabs: unmasked stores.
    stats_ref[:, 0:128] = stats_ref[:, 0:128] + s
    stats_ref[:, 128:256] = stats_ref[:, 128:256] + q


# ---------------- Call 2: pure VPU FMA normalize -------------------------------------
def _bn_apply_kernel(acc_ref, scale_ref, shift_ref, o_ref):
    # acc_ref:   (C_out_pad, lane_tile) f32
    # scale_ref: (C_out_pad, 1)  shift_ref: (C_out_pad, 1)
    o_ref[...] = (acc_ref[...] * scale_ref[...] + shift_ref[...]).astype(o_ref.dtype)


def sampadding_conv1d_bn(x, weight, bias, gamma, beta, *, eps=1e-5,
                         lane_tile=None, use_bf16_matmul=False):
    """x: (N, C_in, L) -> (N, C_out, L), matching the PyTorch module forward.

    `bias` is accepted for parity with Conv1d but is exactly cancelled by the
    training-mode BatchNorm batch-mean subtraction, so it is never materialized.
    (Not valid for eval-mode BN with running statistics.)
    """
    del bias  # cancelled by BN batch-mean subtraction (training mode)

    N, C_in, L = x.shape
    C_out, _, K = weight.shape
    pad_l, pad_r = (K - 1) // 2, K // 2

    NL = N * L
    sub = 16 if use_bf16_matmul else 8          # bf16 sublane tile is (16, 128)
    in_bytes = 2 if use_bf16_matmul else 4
    C_out_pad = _round_up(C_out, sub)
    CK = C_in * K
    CK_pad = _round_up(CK, sub)

    # ---- lane_tile sizing: ~2 MiB im2col block, clamped and VMEM-budget aware ----
    if lane_tile is None:
        lt = _round_up(max(1, (2 * 1024 * 1024) // (in_bytes * CK_pad)), 128)
        lt = max(512, min(lt, 8192))
    else:
        lt = _round_up(max(128, int(lane_tile)), 128)
    lane_tile = max(128, min(lt, _round_up(NL, 128)))

    vmem_budget = 40 * 1024 * 1024  # leave headroom under the 48 MiB scoped limit

    def _step_bytes(t):
        return (2 * CK_pad * t * in_bytes        # im2col double buffer
                + 2 * C_out_pad * t * 4          # acc output double buffer
                + C_out_pad * CK_pad * in_bytes  # resident weight
                + C_out_pad * 256 * 4)           # stats accumulator

    while lane_tile > 128 and _step_bytes(lane_tile) > vmem_budget:
        lane_tile = max(128, _round_up(lane_tile // 2, 128))

    NL_pad = _round_up(NL, lane_tile)
    n_tiles = NL_pad // lane_tile

    # ---- pad -> transpose -> im2col (fused by XLA into one preprocessing pass) ----
    x_p = jnp.pad(x, ((0, 0), (0, 0), (pad_l, pad_r)))                 # (N, C_in, L+K-1)
    x_t = jnp.transpose(x_p, (1, 0, 2))                                # (C_in, N, L+K-1)
    taps = jnp.stack([x_t[:, :, k:k + L] for k in range(K)], axis=1)   # (C_in, K, N, L)
    im2col = taps.reshape(CK, NL)
    im2col = jnp.pad(im2col, ((0, CK_pad - CK), (0, NL_pad - NL)))     # zero pad

    w2 = jnp.pad(weight.reshape(C_out, CK),
                 ((0, C_out_pad - C_out), (0, CK_pad - CK)))

    if use_bf16_matmul:
        # MXU-native bf16 operands; accumulation and BN math stay f32.
        im2col = im2col.astype(jnp.bfloat16)
        w2 = w2.astype(jnp.bfloat16)

    cparams = pltpu.CompilerParams(
        dimension_semantics=("arbitrary",),       # stats accumulator is sequential
        vmem_limit_bytes=48 * 1024 * 1024,
    )

    # ---- call 1: conv + stats --------------------------------------------------------
    acc, stats = pl.pallas_call(
        _conv_stats_kernel,
        out_shape=(jax.ShapeDtypeStruct((C_out_pad, NL_pad), jnp.float32),
                   jax.ShapeDtypeStruct((C_out_pad, 256), jnp.float32)),
        grid_spec=pltpu.PrefetchScalarGridSpec(
            num_scalar_prefetch=0,
            grid=(n_tiles,),
            in_specs=[
                pl.BlockSpec((CK_pad, lane_tile), lambda t: (0, t)),
                pl.BlockSpec((C_out_pad, CK_pad), lambda t: (0, 0)),   # resident weight
            ],
            out_specs=[
                pl.BlockSpec((C_out_pad, lane_tile), lambda t: (0, t)),
                pl.BlockSpec((C_out_pad, 256), lambda t: (0, 0)),      # pinned accumulator
            ],
        ),
        compiler_params=cparams,
    )(im2col, w2)

    # ---- tiny finalize in the wrapper (C_out elements; fused by XLA) -----------------
    # NOTE: one-pass E[x^2]-E[x]^2 in f32; fine for typical activation scales.
    ssum = stats[:C_out, 0]
    sssq = stats[:C_out, 128]
    inv_count = 1.0 / NL                          # true count; padded lanes contribute 0
    mean = ssum * inv_count
    var = jnp.maximum(sssq * inv_count - mean * mean, 0.0)
    scale = gamma * jax.lax.rsqrt(var + float(eps))
    shift = beta - mean * scale
    scale_p = jnp.pad(scale, (0, C_out_pad - C_out)).reshape(C_out_pad, 1).astype(jnp.float32)
    shift_p = jnp.pad(shift, (0, C_out_pad - C_out)).reshape(C_out_pad, 1).astype(jnp.float32)

    # ---- call 2: normalize (pure VPU FMA; megacore-shardable tile axis) ---------------
    out2d = pl.pallas_call(
        _bn_apply_kernel,
        out_shape=jax.ShapeDtypeStruct((C_out_pad, NL_pad), x.dtype),
        grid_spec=pltpu.PrefetchScalarGridSpec(
            num_scalar_prefetch=0,
            grid=(n_tiles,),
            in_specs=[
                pl.BlockSpec((C_out_pad, lane_tile), lambda t: (0, t)),
                pl.BlockSpec((C_out_pad, 1), lambda t: (0, 0)),
                pl.BlockSpec((C_out_pad, 1), lambda t: (0, 0)),
            ],
            out_specs=pl.BlockSpec((C_out_pad, lane_tile), lambda t: (0, t)),
        ),
        compiler_params=pltpu.CompilerParams(
            dimension_semantics=("parallel",),
            vmem_limit_bytes=48 * 1024 * 1024,
        ),
    )(acc, scale_p, shift_p)

    # Padded lanes hold `shift` (not zero) and padded channels hold 0 — the slice
    # below is what makes the result exact; do not feed the padded slab downstream.
    out = out2d[:C_out, :NL].reshape(C_out, N, L)
    return jnp.transpose(out, (1, 0, 2))


def _reference(x, weight, bias, gamma, beta, eps=1e-5):
    """Pure-JAX reference mirroring pad -> conv1d(+bias) -> batchnorm1d (training)."""
    K = weight.shape[-1]
    pad_l, pad_r = (K - 1) // 2, K // 2
    x_pad = jnp.pad(x, ((0, 0), (0, 0), (pad_l, pad_r)))
    conv = jax.lax.conv_general_dilated(
        x_pad, weight, window_strides=(1,), padding="VALID",
        dimension_numbers=("NCH", "OIH", "NCH")) + bias[None, :, None]
    mean = conv.mean(axis=(0, 2), keepdims=True)
    var = ((conv - mean) ** 2).mean(axis=(0, 2), keepdims=True)
    xhat = (conv - mean) / jnp.sqrt(var + eps)
    return xhat * gamma[None, :, None] + beta[None, :, None]


def _make_inputs(key, N, C_in, C_out, L, K):
    kx, kw, kb, kg, kbe = jax.random.split(key, 5)
    x = jax.random.normal(kx, (N, C_in, L), dtype=jnp.float32)
    weight = 0.1 * jax.random.normal(kw, (C_out, C_in, K), dtype=jnp.float32)
    bias = 0.1 * jax.random.normal(kb, (C_out,), dtype=jnp.float32)
    gamma = 1.0 + 0.1 * jax.random.normal(kg, (C_out,), dtype=jnp.float32)
    beta = 0.1 * jax.random.normal(kbe, (C_out,), dtype=jnp.float32)
    return x, weight, bias, gamma, beta


if __name__ == "__main__":
    key = jax.random.PRNGKey(0)
    k1, k2, k3, k4 = jax.random.split(key, 4)

    # 1) Base config from the module: batch=2, in_ch=4, out_ch=8, L=16, K=3 (f32).
    x, w, b, g, be = _make_inputs(k1, 2, 4, 8, 16, 3)
    out = jax.block_until_ready(sampadding_conv1d_bn(x, w, b, g, be))
    ref = _reference(x, w, b, g, be)
    assert out.shape == (2, 8, 16), out.shape
    assert jnp.allclose(out, ref, rtol=1e-4, atol=1e-4), float(
        jnp.max(jnp.abs(out - ref)))

    # 2) Even kernel size (asymmetric pad) + non-8-multiple channels.
    x, w, b, g, be = _make_inputs(k2, 3, 3, 6, 20, 4)
    out = jax.block_until_ready(sampadding_conv1d_bn(x, w, b, g, be))
    ref = _reference(x, w, b, g, be)
    assert out.shape == (3, 6, 20), out.shape
    assert jnp.allclose(out, ref, rtol=1e-4, atol=1e-4), float(
        jnp.max(jnp.abs(out - ref)))

    # 3) Multi-tile grid in f32 (exercises the pinned stats accumulator across tiles)
    #    at tight tolerance.
    x, w, b, g, be = _make_inputs(k3, 2, 4, 8, 200, 3)
    out = jax.block_until_ready(sampadding_conv1d_bn(x, w, b, g, be, lane_tile=128))
    ref = _reference(x, w, b, g, be)
    assert out.shape == (2, 8, 200), out.shape
    assert jnp.allclose(out, ref, rtol=1e-4, atol=1e-4), float(
        jnp.max(jnp.abs(out - ref)))

    # 4) Multi-tile + bf16 MXU operand path (16-sublane padding; looser tolerance).
    x, w, b, g, be = _make_inputs(k4, 2, 4, 8, 200, 3)
    out = jax.block_until_ready(
        sampadding_conv1d_bn(x, w, b, g, be, lane_tile=128, use_bf16_matmul=True))
    ref = _reference(x, w, b, g, be)
    assert out.shape == (2, 8, 200), out.shape
    assert jnp.allclose(out, ref, rtol=5e-2, atol=5e-2), float(
        jnp.max(jnp.abs(out - ref)))

    print("KERNEL_OK")
</pallas_src>

<mosaic_0001>
module attributes {stable_mosaic.version = 11 : i64} {
  func.func @_conv_stats_kernel(%arg0: i32, %arg1: memref<16x128xf32, #tpu.memory_space<vmem>>, %arg2: memref<8x16xf32, #tpu.memory_space<vmem>>, %arg3: memref<8x128xf32, #tpu.memory_space<vmem>>, %arg4: memref<8x256xf32, #tpu.memory_space<vmem>>) attributes {dimension_semantics = [#tpu.dimension_semantics<arbitrary>], iteration_bounds = array<i64: 1>, scalar_prefetch = 0 : i64, scratch_operands = 0 : i64, tpu.core_type = #tpu.core_type<tc>, window_params = [{transform_indices = @transform_0, window_bounds = array<i64: 16, 128>}, {pipeline_mode = #tpu.pipeline_mode<synchronous>, transform_indices = @transform_1, window_bounds = array<i64: 8, 16>}, {transform_indices = @transform_2, window_bounds = array<i64: 8, 128>}, {pipeline_mode = #tpu.pipeline_mode<synchronous>, transform_indices = @transform_3, window_bounds = array<i64: 8, 256>}]} {
    %c0 = arith.constant 0 : index
    %c0_0 = arith.constant 0 : index
    %0 = vector.load %arg2[%c0, %c0_0] : memref<8x16xf32, #tpu.memory_space<vmem>>, vector<8x16xf32>
    %c0_1 = arith.constant 0 : index
    %c0_2 = arith.constant 0 : index
    %1 = vector.load %arg1[%c0_1, %c0_2] : memref<16x128xf32, #tpu.memory_space<vmem>>, vector<16x128xf32>
    %cst = arith.constant dense<0.000000e+00> : vector<8x128xf32>
    %2 = tpu.matmul %0, %1, %cst {dimension_numbers = #tpu.dot_dimension_numbers<[1], [0], [0], [1], [0, 0, 1, 1], [], []>} : vector<8x16xf32>, vector<16x128xf32>, vector<8x128xf32> -> vector<8x128xf32>
    %c0_3 = arith.constant 0 : index
    %c0_4 = arith.constant 0 : index
    %3 = vector.load %arg3[%c0_3, %c0_4] : memref<8x128xf32, #tpu.memory_space<vmem>>, vector<8x128xf32>
    tpu.vector_store %arg3[%c0_3, %c0_4], %2 {strides = array<i32>} : memref<8x128xf32, #tpu.memory_space<vmem>>, vector<8x128xf32>,
    %c0_i32 = arith.constant 0 : i32
    %4 = arith.cmpi eq, %arg0, %c0_i32 : i32
    %5 = arith.extui %4 : i1 to i32
    %c0_i32_5 = arith.constant 0 : i32
    %6 = arith.cmpi ne, %5, %c0_i32_5 : i32
    scf.if %6 {
      %cst_15 = arith.constant 0.000000e+00 : f32
      %20 = vector.broadcast %cst_15 : f32 to vector<8x256xf32>
      %c0_16 = arith.constant 0 : index
      %c0_17 = arith.constant 0 : index
      %21 = vector.load %arg4[%c0_16, %c0_17] : memref<8x256xf32, #tpu.memory_space<vmem>>, vector<8x256xf32>
      tpu.vector_store %arg4[%c0_16, %c0_17], %20 {strides = array<i32>} : memref<8x256xf32, #tpu.memory_space<vmem>>, vector<8x256xf32>,
    } else {
    }
    %cst_6 = arith.constant dense<0.000000e+00> : vector<8xf32>
    %7 = vector.multi_reduction <add>, %2, %cst_6 [1] : vector<8x128xf32> to vector<8xf32>
    %8 = vector.shape_cast %7 : vector<8xf32> to vector<8x1xf32>
    %9 = arith.mulf %2, %2 : vector<8x128xf32>
    %cst_7 = arith.constant dense<0.000000e+00> : vector<8xf32>
    %10 = vector.multi_reduction <add>, %9, %cst_7 [1] : vector<8x128xf32> to vector<8xf32>
    %11 = vector.shape_cast %10 : vector<8xf32> to vector<8x1xf32>
    %c0_8 = arith.constant 0 : index
    %c0_9 = arith.constant 0 : index
    %12 = vector.load %arg4[%c0_8, %c0_9] : memref<8x256xf32, #tpu.memory_space<vmem>>, vector<8x128xf32>
    %13 = vector.broadcast %8 : vector<8x1xf32> to vector<8x128xf32>
    %14 = arith.addf %12, %13 : vector<8x128xf32>
    %c0_10 = arith.constant 0 : index
    %c0_11 = arith.constant 0 : index
    %15 = vector.load %arg4[%c0_10, %c0_11] : memref<8x256xf32, #tpu.memory_space<vmem>>, vector<8x128xf32>
    tpu.vector_store %arg4[%c0_10, %c0_11], %14 {strides = array<i32>} : memref<8x256xf32, #tpu.memory_space<vmem>>, vector<8x128xf32>,
    %c0_12 = arith.constant 0 : index
    %c128 = arith.constant 128 : index
    %16 = vector.load %arg4[%c0_12, %c128] : memref<8x256xf32, #tpu.memory_space<vmem>>, vector<8x128xf32>
    %17 = vector.broadcast %11 : vector<8x1xf32> to vector<8x128xf32>
    %18 = arith.addf %16, %17 : vector<8x128xf32>
    %c0_13 = arith.constant 0 : index
    %c128_14 = arith.constant 128 : index
    %19 = vector.load %arg4[%c0_13, %c128_14] : memref<8x256xf32, #tpu.memory_space<vmem>>, vector<8x128xf32>
    tpu.vector_store %arg4[%c0_13, %c128_14], %18 {strides = array<i32>} : memref<8x256xf32, #tpu.memory_space<vmem>>, vector<8x128xf32>,
    return
  }
  func.func @transform_0(%arg0: i32) -> (i32, i32) {
    %c0_i32 = arith.constant 0 : i32
    %c0_i32_0 = arith.constant 0 : i32
    return %c0_i32, %arg0 : i32, i32
  }
  func.func @transform_1(%arg0: i32) -> (i32, i32) {
    %c0_i32 = arith.constant 0 : i32
    %c0_i32_0 = arith.constant 0 : i32
    %c0_i32_1 = arith.constant 0 : i32
    return %c0_i32, %c0_i32_0 : i32, i32
  }
  func.func @transform_2(%arg0: i32) -> (i32, i32) {
    %c0_i32 = arith.constant 0 : i32
    %c0_i32_0 = arith.constant 0 : i32
    return %c0_i32, %arg0 : i32, i32
  }
  func.func @transform_3(%arg0: i32) -> (i32, i32) {
    %c0_i32 = arith.constant 0 : i32
    %c0_i32_0 = arith.constant 0 : i32
    %c0_i32_1 = arith.constant 0 : i32
    return %c0_i32, %c0_i32_0 : i32, i32
  }
}

</mosaic_0001>

<llo_original>
// kernel: tpu_custom_call.1
$region0: #{tpu_custom_call.1}
  #allocation0 [shape = 'u32[]', space=smem, size = 0x4, offset = 0x4, fixed_abs, tag = 'smem constant byte address 0x4 - core index']
  #allocation1 [shape = 'u32[144,128]{1,0:T(1,128)}', space=vmem, size = 0x12000, scoped, tag = 'internal scratch']
  %s0 = inlined_call_operand.hbm [shape: f32[16,128], index: 0, kind: input, shape index: {}]
  %s1 = inlined_call_operand.hbm [shape: f32[8,16], index: 1, kind: input, shape index: {}]
  %s2 = inlined_call_operand.hbm [shape: f32[8,128], index: 2, kind: output, shape index: {0}]
  %s3 = inlined_call_operand.hbm [shape: f32[8,256], index: 3, kind: output, shape index: {1}]
  %4 = xla_tuple %s2, %s3
  %s5 = sld [smem:[#allocation0]]
  $region38: #{tpu_custom_call.1} parent=0
    _
  %s7 = ssub.s32 1, %s5
  %s8 = scalar_select 0, %s7, %s5
  $region1: #{tpu_custom_call.1} parent=0
    #allocation2 [shape = 'u8[8192]{0}', space=vmem, size = 0x2000, scoped, tag = 'input window, operand 0, single buffered']
    #allocation3 [shape = 's32[1]{0}', space=sflag, size = 0x4, scoped, tag = 'scoped memory for tpu_custom_call.1']
    #allocation4 [shape = 's32[1]{0}', space=sflag, size = 0x4, scoped, tag = 'scoped memory for tpu_custom_call.1']
    #allocation5 [shape = 'u8[4096]{0}', space=vmem, size = 0x1000, scoped, tag = 'input window, operand 1, single buffered']
    #allocation6 [shape = 's32[1]{0}', space=sflag, size = 0x4, scoped, tag = 'scoped memory for tpu_custom_call.1']
    #allocation7 [shape = 'u8[4096]{0}', space=vmem, size = 0x1000, scoped, tag = 'output window, operand 0, single buffered']
    #allocation8 [shape = 'u8[8192]{0}', space=vmem, size = 0x2000, scoped, tag = 'output window, operand 1, single buffered']
    #allocation9 [shape = 's32[1]{0}', space=sflag, size = 0x4, scoped, tag = 'scoped memory for tpu_custom_call.1']
    %9 = vsyncpa [#allocation3], 0
    %10 = vsyncpa [#allocation6], 0
    %11 = vsyncpa [#allocation4], 0
    %12 = vsyncpa [#allocation9], 0
    // Predicated region
    $region2: #{tpu_custom_call.1} parent=1 // pred_check
      _
    $region3: #{tpu_custom_call.1} parent=1 // pred_check_branch
      %14 = sbr.rel (0) target = $region5
    $region4: #{tpu_custom_call.1} parent=1 // pred_region
      %s16 = ssub.s32 256, 256
      %17 = vsyncadd [#allocation3], %s16
      %s18 = sshll.u32 [#allocation2], 4
      %s19 = int_to_ptr.vmem [resolvable:$true] %s18
      %24 = dma.hbm_to_vmem [thread:$0]  %s0, 256, %s19, [#allocation3], 128, 128, 8
    $region5: #{tpu_custom_call.1} parent=1 // pred_fallthru
      _
    // Predicated region
    $region6: #{tpu_custom_call.1} parent=1 // pred_check
      _
    $region7: #{tpu_custom_call.1} parent=1 // pred_check_branch
      %26 = sbr.rel (0) target = $region9
    $region8: #{tpu_custom_call.1} parent=1 // pred_region
      %s28 = ssub.s32 128, 128
      %29 = vsyncadd [#allocation6], %s28
      %s31 = sshll.u32 [#allocation5], 4
      %s32 = int_to_ptr.vmem [resolvable:$true] %s31
      %34 = dma.hbm_to_vmem [thread:$0]  %s1, 128, %s32, [#allocation6]
    $region9: #{tpu_custom_call.1} parent=1 // pred_fallthru
      _
    // Predicated region
    $region10: #{tpu_custom_call.1} parent=1 // pred_check
      _
    $region11: #{tpu_custom_call.1} parent=1 // pred_check_branch
      %36 = sbr.rel (0) target = $region13
    $region12: #{tpu_custom_call.1} parent=1 // pred_region
      %37 = dma.done [#allocation3], 256
    $region13: #{tpu_custom_call.1} parent=1 // pred_fallthru
      _
    // Predicated region
    $region14: #{tpu_custom_call.1} parent=1 // pred_check
      _
    $region15: #{tpu_custom_call.1} parent=1 // pred_check_branch
      %39 = sbr.rel (0) target = $region17
    $region16: #{tpu_custom_call.1} parent=1 // pred_region
      %40 = dma.done [#allocation6], 128
    $region17: #{tpu_custom_call.1} parent=1 // pred_fallthru
      _
    %v41 = vld [vmem:[#allocation5] sm:$0xff]
    %v42 = vld [vmem:[#allocation2] sm:$0xff]
    %v43 = vld [vmem:[#allocation2 + $0x8] sm:$0xff]
    %vm44 = vcmask 130048
    %v46 = vsel %vm44, %v41, 0
    %48 = vmatprep.subr.mxu0 0.0
    %49 = vmatpush1.msra.mxu0 0.0
    %50 = vmatprep.subr.mxu0 0.0
    %51 = vmatpush1.msra.mxu0 0.0
    %52 = vmatprep.subr.mxu0 0.0
    %53 = vmatpush1.msra.mxu0 0.0
    %54 = vmatprep.subr.mxu0 0.0
    %55 = vmatpush1.msra.mxu0 0.0
    %56 = vmatprep.subr.mxu0 0.0
    %57 = vmatpush1.msra.mxu0 0.0
    %58 = vmatprep.subr.mxu0 0.0
    %59 = vmatpush1.msra.mxu0 0.0
    %60 = vmatprep.subr.mxu0 0.0
    %61 = vmatpush1.msra.mxu0 0.0
    %62 = vmatprep.subr.mxu0 0.0
    %63 = vmatpush1.msra.mxu0 0.0
    %64 = vmatprep.subr.mxu0 0.0
    %65 = vmatpush1.msra.mxu0 0.0
    %66 = vmatprep.subr.mxu0 0.0
    %67 = vmatpush1.msra.mxu0 0.0
    %68 = vmatprep.subr.mxu0 0.0
    %69 = vmatpush1.msra.mxu0 0.0
    %70 = vmatprep.subr.mxu0 0.0
    %71 = vmatpush1.msra.mxu0 0.0
    %72 = vmatprep.subr.mxu0 0.0
    %73 = vmatpush1.msra.mxu0 0.0
    %74 = vmatprep.subr.mxu0 0.0
    %75 = vmatpush1.msra.mxu0 0.0
    %76 = vmatprep.subr.mxu0 0.0
    %77 = vmatpush1.msra.mxu0 %v43
    %78 = vmatprep.subr.mxu0 0.0
    %79 = vmatpush1.msra.mxu0 %v42
    %80 = vmatprep.subr.mxu0 0.0
    %81 = vmatpush2.msra.mxu0 0.0
    %82 = vmatprep.subr.mxu0 0.0
    %83 = vmatpush2.msra.mxu0 0.0
    %84 = vmatprep.subr.mxu0 0.0
    %85 = vmatpush2.msra.mxu0 0.0
    %86 = vmatprep.subr.mxu0 0.0
    %87 = vmatpush2.msra.mxu0 0.0
    %88 = vmatprep.subr.mxu0 0.0
    %89 = vmatpush2.msra.mxu0 0.0
    %90 = vmatprep.subr.mxu0 0.0
    %91 = vmatpush2.msra.mxu0 0.0
    %92 = vmatprep.subr.mxu0 0.0
    %93 = vmatpush2.msra.mxu0 0.0
    %94 = vmatprep.subr.mxu0 0.0
    %95 = vmatpush2.msra.mxu0 0.0
    %96 = vmatprep.subr.mxu0 0.0
    %97 = vmatpush2.msra.mxu0 0.0
    %98 = vmatprep.subr.mxu0 0.0
    %99 = vmatpush2.msra.mxu0 0.0
    %100 = vmatprep.subr.mxu0 0.0
    %101 = vmatpush2.msra.mxu0 0.0
    %102 = vmatprep.subr.mxu0 0.0
    %103 = vmatpush2.msra.mxu0 0.0
    %104 = vmatprep.subr.mxu0 0.0
    %105 = vmatpush2.msra.mxu0 0.0
    %106 = vmatprep.subr.mxu0 0.0
    %107 = vmatpush2.msra.mxu0 0.0
    %108 = vmatprep.subr.mxu0 0.0
    %109 = vmatpush2.msra.mxu0 0.0
    %110 = vmatprep.subr.mxu0 0.0
    %111 = vmatpush2.msra.mxu0 0.0
    %112 = vmatprep.mubr.f32.mxu0 0.0
    %113 = vmatmul.mubr.f32.gmra.mxu0 %v46
    %v114 = vpop.f32.mrf.mxu0
    %v115 = vadd.f32 0.0, %v114
    %v116 = vpop.f32.mrf.mxu0
    %117 = vdwg.mxu0
    %118 = vst [vmem:[#allocation7] sm:$0xff] %v115
    %p119 = scmp.eq.s32.totalorder 0, 0
    // Predicated region
    $region18: #{tpu_custom_call.1} parent=1 // pred_check
      %p120 = pneg %p119
    $region19: #{tpu_custom_call.1} parent=1 // pred_check_branch
      %122 = sbr.rel (%p120) target = $region21
    $region20: #{tpu_custom_call.1} parent=1 // pred_region
      %123 = vst [vmem:[#allocation8] sm:$0xff] 0.0
      %124 = vst [vmem:[#allocation8 + $0x8] sm:$0xff] 0.0
    $region21: #{tpu_custom_call.1} parent=1 // pred_fallthru
      _
    %125 = vadd.xlane.f32.xlu0 %v115
    %v126 = vpop.xlane.xlu0 %125
    %v127 = vmul.f32 %v115, %v115
    %128 = vadd.xlane.f32.xlu0 %v127
    %v129 = vpop.xlane.xlu0 %128
    %v130 = vld [vmem:[#allocation8] sm:$0xff]
    %v131 = vadd.f32 %v130, %v126
    %132 = vst [vmem:[#allocation8] sm:$0xff] %v131
    %v133 = vld [vmem:[#allocation8 + $0x8] sm:$0xff]
    %v134 = vadd.f32 %v133, %v129
    %135 = vst [vmem:[#allocation8 + $0x8] sm:$0xff] %v134
    // Predicated region
    $region22: #{tpu_custom_call.1} parent=1 // pred_check
      _
    $region23: #{tpu_custom_call.1} parent=1 // pred_check_branch
      %137 = sbr.rel (0) target = $region25
    $region24: #{tpu_custom_call.1} parent=1 // pred_region
      %s139 = ssub.s32 128, 128
      %140 = vsyncadd [#allocation4], %s139
      %s142 = sshll.u32 [#allocation7], 4
      %s143 = int_to_ptr.vmem [resolvable:$true] %s142
      %145 = dma.vmem_to_hbm [thread:$0]  %s143, 128, %s2, [#allocation4]
    $region25: #{tpu_custom_call.1} parent=1 // pred_fallthru
      _
    // Predicated region
    $region26: #{tpu_custom_call.1} parent=1 // pred_check
      _
    $region27: #{tpu_custom_call.1} parent=1 // pred_check_branch
      %147 = sbr.rel (0) target = $region29
    $region28: #{tpu_custom_call.1} parent=1 // pred_region
      %s149 = ssub.s32 256, 256
      %150 = vsyncadd [#allocation9], %s149
      %s152 = sshll.u32 [#allocation8], 4
      %s153 = int_to_ptr.vmem [resolvable:$true] %s152
      %155 = dma.vmem_to_hbm [thread:$0]  %s153, 256, %s3, [#allocation9]
    $region29: #{tpu_custom_call.1} parent=1 // pred_fallthru
      _
    // Predicated region
    $region30: #{tpu_custom_call.1} parent=1 // pred_check
      _
    $region31: #{tpu_custom_call.1} parent=1 // pred_check_branch
      %157 = sbr.rel (0) target = $region33
    $region32: #{tpu_custom_call.1} parent=1 // pred_region
      %158 = dma.done [#allocation4], 128
    $region33: #{tpu_custom_call.1} parent=1 // pred_fallthru
      _
    // Predicated region
    $region34: #{tpu_custom_call.1} parent=1 // pred_check
      _
    $region35: #{tpu_custom_call.1} parent=1 // pred_check_branch
      %160 = sbr.rel (0) target = $region37
    $region36: #{tpu_custom_call.1} parent=1 // pred_region
      %161 = dma.done [#allocation9], 256
    $region37: #{tpu_custom_call.1} parent=1 // pred_fallthru
      _
    %162 = vsyncpa [#allocation3], 1
    %163 = vsyncpa [#allocation6], 1
    %164 = vsyncpa [#allocation4], 1
    %165 = vsyncpa [#allocation9], 1

</llo_original>
